<compile_context>
chip_gen: v7x
topology: tpu7x:2x2x1
jax: 0.10.0
libtpu: 0.0.40
codegen_flags: <defaults>
</compile_context>

<pallas_src>
import functools
import math

import jax
import jax.numpy as jnp
from jax.experimental import pallas as pl
from jax.experimental.pallas import tpu as pltpu

_INV_SQRT2 = 1.0 / math.sqrt(2.0)
_LANE = 128
_SUB = 16  # bf16 sublane packing for the activation tiles


def _round_up(x, m):
    return (x + m - 1) // m * m


# --------------------------------------------------------------------------- #
# Kernel
# --------------------------------------------------------------------------- #
def _resmlp_kernel(x_ref, t_ref, c_ref, w1_ref, wt_ref, wc_ref, b_in_ref,
                   gamma_ref, beta_ref, w2_ref, b2_ref, o_ref,
                   *, approximate_gelu):
    x = x_ref[...]  # (tb, dim_p) f32 -- matmul input AND residual (read once)

    # Fused input projection: three bf16 matmuls accumulated in f32 on the MXU.
    h = jnp.dot(x.astype(jnp.bfloat16), w1_ref[...],
                preferred_element_type=jnp.float32)
    h = h + jnp.dot(t_ref[...].astype(jnp.bfloat16), wt_ref[...],
                    preferred_element_type=jnp.float32)
    h = h + jnp.dot(c_ref[...].astype(jnp.bfloat16), wc_ref[...],
                    preferred_element_type=jnp.float32)
    h = h + b_in_ref[...]                      # b1 + bt + bc (pre-summed)

    # LayerNorm over the TRUE hidden dim, centered two-pass statistics
    # (numerically robust; the lane reductions run on the XLU slot).
    inv_h = 1.0 / h.shape[-1]
    mean = jnp.sum(h, axis=-1, keepdims=True) * inv_h
    d = h - mean
    var = jnp.sum(d * d, axis=-1, keepdims=True) * inv_h
    hn = d * jax.lax.rsqrt(var + 1e-5)         # eps matches torch default
    hn = hn * gamma_ref[...] + beta_ref[...]

    if approximate_gelu:
        # tanh-approx GELU: transcendental goes to the otherwise-idle EUP slot.
        hg = jax.nn.gelu(hn, approximate=True)
    else:
        # Exact erf GELU (torch.nn.GELU() default semantics).
        hg = hn * (0.5 + 0.5 * jax.lax.erf(hn * _INV_SQRT2))
    # TODO(synk): on v6e/v7x the gamma/beta affine + GELU could run in bf16 for
    # ~2x VALU throughput; kept in f32 so the same kernel is also right for v5e.

    # fc2 (bf16 into MXU, f32 accumulate) + residual; w2/b2 columns are
    # zero-padded to the lane-dense output width, so the store is unmasked.
    out = jnp.dot(hg.astype(jnp.bfloat16), w2_ref[...],
                  preferred_element_type=jnp.float32) + b2_ref[...]
    o_ref[...] = (out + x.astype(jnp.float32)).astype(o_ref.dtype)


# --------------------------------------------------------------------------- #
# Tile / VMEM planning (generation aware)
# --------------------------------------------------------------------------- #
def _num_tensorcores():
    try:
        kind = jax.devices()[0].device_kind.lower().replace(" ", "")
    except Exception:
        return 1
    return 2 if ("v7" in kind or "tpu7" in kind) else 1


def _vmem_capacity_bytes():
    try:
        return int(pltpu.get_tpu_info().vmem_capacity_bytes)
    except Exception:
        return 64 << 20  # conservative default = v7x physical VMEM


def _tile_vmem_bytes(tb, k_in, hidden, dim_p):
    act_in = 2 * tb * k_in * 4                           # double-buffered x/t/c tiles (f32)
    act_out = 2 * tb * dim_p * 4                         # double-buffered output tile
    weights = 2 * (k_in * hidden + hidden * dim_p) * 2   # bf16 weights (2 pipeline buffers)
    vectors = 2 * (3 * hidden + dim_p) * 4               # biases / gamma / beta
    inter = tb * hidden * 10                             # live f32 h & centered + bf16 hg + slack
    return act_in + act_out + weights + vectors + inter


def _plan_tiles(batch, k_in, hidden, dim_p, block_b):
    b16 = _round_up(batch, _SUB)
    tb = max(_SUB, min(_round_up(block_b, _SUB), b16))
    # v7x megacore: make sure the "parallel" grid axis has >= 2 steps so both
    # TensorCores get work (v5e/v6e keep the largest tile).
    if _num_tensorcores() >= 2 and b16 >= 2 * _SUB and b16 // tb < 2:
        tb = max(_SUB, _round_up(b16 // 2, _SUB))
    # Shrink the tile until the whole plan fits the per-generation VMEM budget.
    budget = int(_vmem_capacity_bytes() * 0.75)
    while tb > _SUB and _tile_vmem_bytes(tb, k_in, hidden, dim_p) > budget:
        tb = max(_SUB, _round_up(tb // 2, _SUB))
    b_pad = _round_up(b16, tb)
    return tb, b_pad


# --------------------------------------------------------------------------- #
# Wrapper
# --------------------------------------------------------------------------- #
def pack_params(params):
    """Fold per-layer params into the lane-dense layout the kernel expects."""
    dim, hidden = params["w1"].shape
    dim_p = _round_up(dim, _LANE)
    w1, w2, b2 = params["w1"], params["w2"], params["b2"]
    if dim_p != dim:
        w1 = jnp.pad(w1, ((0, dim_p - dim), (0, 0)))   # zero rows: padded x cols are inert
        w2 = jnp.pad(w2, ((0, 0), (0, dim_p - dim)))   # zero cols: lane-dense output
        b2 = jnp.pad(b2, ((0, 0), (0, dim_p - dim)))
    return {
        "w1": w1.astype(jnp.bfloat16),
        "wt": params["wt"].astype(jnp.bfloat16),
        "wc": params["wc"].astype(jnp.bfloat16),
        "b_in": (params["b1"] + params["bt"] + params["bc"]).astype(jnp.float32),
        "gamma": params["gamma"].astype(jnp.float32),
        "beta": params["beta"].astype(jnp.float32),
        "w2": w2.astype(jnp.bfloat16),
        "b2": b2.astype(jnp.float32),
    }


@functools.partial(jax.jit, static_argnames=("block_b", "approximate_gelu"))
def resmlp_block(x, time_emb, cond_emb, packed, *, block_b=256,
                 approximate_gelu=False):
    B, dim = x.shape
    tdim = time_emb.shape[-1]
    cdim = cond_emb.shape[-1]
    hidden = packed["w1"].shape[1]
    dim_p = packed["w2"].shape[1]
    assert packed["w1"].shape[0] == dim_p
    k_in = dim_p + tdim + cdim

    tb, b_pad = _plan_tiles(B, k_in, hidden, dim_p, block_b)

    # Only pad when actually needed (dim % 128 == 0 and B % tb == 0 -> no copies).
    pad_rows, pad_cols = b_pad - B, dim_p - dim
    x_in = jnp.pad(x, ((0, pad_rows), (0, pad_cols))) if (pad_rows or pad_cols) else x
    t_in = jnp.pad(time_emb, ((0, pad_rows), (0, 0))) if pad_rows else time_emb
    c_in = jnp.pad(cond_emb, ((0, pad_rows), (0, 0))) if pad_rows else cond_emb

    plan_bytes = _tile_vmem_bytes(tb, k_in, hidden, dim_p)
    cap = int(_vmem_capacity_bytes() * 0.85)
    vmem_limit = max(min(int(plan_bytes * 1.4) + (4 << 20), cap), min(32 << 20, cap))

    weight_bytes = (k_in * hidden + hidden * dim_p) * 2 + (3 * hidden + dim_p) * 4
    cost = pl.CostEstimate(
        flops=2 * b_pad * hidden * (k_in + dim_p),
        transcendentals=2 * b_pad * hidden,
        bytes_accessed=b_pad * (k_in + dim_p) * 4 + weight_bytes,
    )

    row = lambda i: (i, 0)
    const = lambda i: (0, 0)
    kernel = functools.partial(_resmlp_kernel, approximate_gelu=approximate_gelu)

    out = pl.pallas_call(
        kernel,
        out_shape=jax.ShapeDtypeStruct((b_pad, dim_p), x.dtype),
        grid=(b_pad // tb,),
        in_specs=[
            pl.BlockSpec((tb, dim_p), row),        # x (matmul input + residual)
            pl.BlockSpec((tb, tdim), row),         # time_emb
            pl.BlockSpec((tb, cdim), row),         # cond_emb
            pl.BlockSpec((dim_p, hidden), const),  # w1 (VMEM-resident, constant block)
            pl.BlockSpec((tdim, hidden), const),   # time_proj weight
            pl.BlockSpec((cdim, hidden), const),   # cond_proj weight
            pl.BlockSpec((1, hidden), const),      # b1 + bt + bc
            pl.BlockSpec((1, hidden), const),      # LN gamma
            pl.BlockSpec((1, hidden), const),      # LN beta
            pl.BlockSpec((hidden, dim_p), const),  # w2 (zero-padded cols)
            pl.BlockSpec((1, dim_p), const),       # b2
        ],
        out_specs=pl.BlockSpec((tb, dim_p), row),
        compiler_params=pltpu.CompilerParams(
            dimension_semantics=("parallel",),
            vmem_limit_bytes=vmem_limit,
        ),
        cost_estimate=cost,
    )(x_in, t_in, c_in, packed["w1"], packed["wt"], packed["wc"], packed["b_in"],
      packed["gamma"], packed["beta"], packed["w2"], packed["b2"])

    return out[:B, :dim]


# --------------------------------------------------------------------------- #
# Params / references
# --------------------------------------------------------------------------- #
def init_params(key, dim, time_emb_dim, cond_emb_dim, dtype=jnp.float32):
    hidden = dim * 4
    keys = jax.random.split(key, 4)

    def linear(k, fan_in, fan_out):
        kw, kb = jax.random.split(k)
        bound = 1.0 / math.sqrt(fan_in)
        w = jax.random.uniform(kw, (fan_in, fan_out), dtype, -bound, bound)
        b = jax.random.uniform(kb, (1, fan_out), dtype, -bound, bound)
        return w, b

    w1, b1 = linear(keys[0], dim, hidden)
    wt, bt = linear(keys[1], time_emb_dim, hidden)
    wc, bc = linear(keys[2], cond_emb_dim, hidden)
    w2, b2 = linear(keys[3], hidden, dim)
    gamma = jnp.ones((1, hidden), dtype)
    beta = jnp.zeros((1, hidden), dtype)
    return {"w1": w1, "b1": b1, "wt": wt, "bt": bt, "wc": wc, "bc": bc,
            "gamma": gamma, "beta": beta, "w2": w2, "b2": b2}


def resmlp_block_ref(x, time_emb, cond_emb, p):
    """Pure-f32 reference matching the PyTorch ResMLPBlock exactly."""
    h = x @ p["w1"] + p["b1"] + time_emb @ p["wt"] + p["bt"] + cond_emb @ p["wc"] + p["bc"]
    mean = jnp.mean(h, axis=-1, keepdims=True)
    var = jnp.mean(jnp.square(h - mean), axis=-1, keepdims=True)
    hn = (h - mean) * jax.lax.rsqrt(var + 1e-5) * p["gamma"] + p["beta"]
    hg = 0.5 * hn * (1.0 + jax.lax.erf(hn * _INV_SQRT2))
    return hg @ p["w2"] + p["b2"] + x


def resmlp_block_ref_bf16(x, time_emb, cond_emb, p):
    """Reference mirroring the kernel's bf16-matmul / f32-accumulate math."""
    f32 = jnp.float32
    h = jnp.dot(x.astype(jnp.bfloat16), p["w1"].astype(jnp.bfloat16),
                preferred_element_type=f32)
    h = h + jnp.dot(time_emb.astype(jnp.bfloat16), p["wt"].astype(jnp.bfloat16),
                    preferred_element_type=f32)
    h = h + jnp.dot(cond_emb.astype(jnp.bfloat16), p["wc"].astype(jnp.bfloat16),
                    preferred_element_type=f32)
    h = h + (p["b1"] + p["bt"] + p["bc"])
    mean = jnp.mean(h, axis=-1, keepdims=True)
    d = h - mean
    var = jnp.mean(d * d, axis=-1, keepdims=True)
    hn = d * jax.lax.rsqrt(var + 1e-5) * p["gamma"] + p["beta"]
    hg = hn * (0.5 + 0.5 * jax.lax.erf(hn * _INV_SQRT2))
    out = jnp.dot(hg.astype(jnp.bfloat16), p["w2"].astype(jnp.bfloat16),
                  preferred_element_type=f32) + p["b2"]
    return out + x


# --------------------------------------------------------------------------- #
# Test
# --------------------------------------------------------------------------- #
if __name__ == "__main__":
    B, dim, time_emb_dim, cond_emb_dim = 8, 32, 16, 16

    key = jax.random.PRNGKey(0)
    kx, kt, kc, kp = jax.random.split(key, 4)
    x = jax.random.normal(kx, (B, dim), jnp.float32)
    time_emb = jax.random.normal(kt, (B, time_emb_dim), jnp.float32)
    cond_emb = jax.random.normal(kc, (B, cond_emb_dim), jnp.float32)

    params = init_params(kp, dim, time_emb_dim, cond_emb_dim)
    packed = pack_params(params)

    ref_f32 = resmlp_block_ref(x, time_emb, cond_emb, params)
    ref_bf16 = resmlp_block_ref_bf16(x, time_emb, cond_emb, params)

    # Default path: exact erf GELU (torch.nn.GELU() semantics).
    out = jax.block_until_ready(resmlp_block(x, time_emb, cond_emb, packed))
    assert out.shape == (B, dim)

    err_tight = float(jnp.max(jnp.abs(out - ref_bf16)))
    assert jnp.allclose(out, ref_bf16, atol=5e-3, rtol=5e-3), \
        f"kernel-vs-bf16-ref max_err={err_tight}"

    err_f32 = float(jnp.max(jnp.abs(out - ref_f32)))
    assert jnp.allclose(out, ref_f32, atol=4e-2, rtol=4e-2), \
        f"kernel-vs-f32(torch) max_err={err_f32}"  # bf16-matmul tolerance

    # EUP-friendly tanh-approx GELU fast path also compiles and stays close.
    out_a = jax.block_until_ready(
        resmlp_block(x, time_emb, cond_emb, packed, approximate_gelu=True))
    err_a = float(jnp.max(jnp.abs(out_a - ref_f32)))
    assert jnp.allclose(out_a, ref_f32, atol=8e-2, rtol=8e-2), \
        f"approx-GELU max_err={err_a}"

    print("KERNEL_OK")
</pallas_src>

<mosaic_0001>
module attributes {stable_mosaic.version = 11 : i64} {
  func.func @_resmlp_kernel(%arg0: i32, %arg1: memref<16x128xf32, #tpu.memory_space<vmem>>, %arg2: memref<16x16xf32, #tpu.memory_space<vmem>>, %arg3: memref<16x16xf32, #tpu.memory_space<vmem>>, %arg4: memref<128x128xbf16, #tpu.memory_space<vmem>>, %arg5: memref<16x128xbf16, #tpu.memory_space<vmem>>, %arg6: memref<16x128xbf16, #tpu.memory_space<vmem>>, %arg7: memref<1x128xf32, #tpu.memory_space<vmem>>, %arg8: memref<1x128xf32, #tpu.memory_space<vmem>>, %arg9: memref<1x128xf32, #tpu.memory_space<vmem>>, %arg10: memref<128x128xbf16, #tpu.memory_space<vmem>>, %arg11: memref<1x128xf32, #tpu.memory_space<vmem>>, %arg12: memref<16x128xf32, #tpu.memory_space<vmem>>) attributes {dimension_semantics = [#tpu.dimension_semantics<parallel>], iteration_bounds = array<i64: 1>, scalar_prefetch = 0 : i64, scratch_operands = 0 : i64, tpu.core_type = #tpu.core_type<tc>, window_params = [{transform_indices = @transform_0, window_bounds = array<i64: 16, 128>}, {transform_indices = @transform_1, window_bounds = array<i64: 16, 16>}, {transform_indices = @transform_2, window_bounds = array<i64: 16, 16>}, {pipeline_mode = #tpu.pipeline_mode<synchronous>, transform_indices = @transform_3, window_bounds = array<i64: 128, 128>}, {pipeline_mode = #tpu.pipeline_mode<synchronous>, transform_indices = @transform_4, window_bounds = array<i64: 16, 128>}, {pipeline_mode = #tpu.pipeline_mode<synchronous>, transform_indices = @transform_5, window_bounds = array<i64: 16, 128>}, {pipeline_mode = #tpu.pipeline_mode<synchronous>, transform_indices = @transform_6, window_bounds = array<i64: 1, 128>}, {pipeline_mode = #tpu.pipeline_mode<synchronous>, transform_indices = @transform_7, window_bounds = array<i64: 1, 128>}, {pipeline_mode = #tpu.pipeline_mode<synchronous>, transform_indices = @transform_8, window_bounds = array<i64: 1, 128>}, {pipeline_mode = #tpu.pipeline_mode<synchronous>, transform_indices = @transform_9, window_bounds = array<i64: 128, 128>}, {pipeline_mode = #tpu.pipeline_mode<synchronous>, transform_indices = @transform_10, window_bounds = array<i64: 1, 128>}, {transform_indices = @transform_11, window_bounds = array<i64: 16, 128>}]} {
    %c0 = arith.constant 0 : index
    %c0_0 = arith.constant 0 : index
    %0 = vector.load %arg1[%c0, %c0_0] : memref<16x128xf32, #tpu.memory_space<vmem>>, vector<16x128xf32>
    %1 = arith.truncf %0 : vector<16x128xf32> to vector<16x128xbf16>
    %c0_1 = arith.constant 0 : index
    %c0_2 = arith.constant 0 : index
    %2 = vector.load %arg4[%c0_1, %c0_2] : memref<128x128xbf16, #tpu.memory_space<vmem>>, vector<128x128xbf16>
    %cst = arith.constant dense<0.000000e+00> : vector<16x128xf32>
    %3 = tpu.matmul %1, %2, %cst {dimension_numbers = #tpu.dot_dimension_numbers<[1], [0], [0], [1], [0, 0, 1, 1], [], []>} : vector<16x128xbf16>, vector<128x128xbf16>, vector<16x128xf32> -> vector<16x128xf32>
    %c0_3 = arith.constant 0 : index
    %c0_4 = arith.constant 0 : index
    %4 = vector.load %arg2[%c0_3, %c0_4] : memref<16x16xf32, #tpu.memory_space<vmem>>, vector<16x16xf32>
    %5 = arith.truncf %4 : vector<16x16xf32> to vector<16x16xbf16>
    %c0_5 = arith.constant 0 : index
    %c0_6 = arith.constant 0 : index
    %6 = vector.load %arg5[%c0_5, %c0_6] : memref<16x128xbf16, #tpu.memory_space<vmem>>, vector<16x128xbf16>
    %cst_7 = arith.constant dense<0.000000e+00> : vector<16x128xf32>
    %7 = tpu.matmul %5, %6, %cst_7 {dimension_numbers = #tpu.dot_dimension_numbers<[1], [0], [0], [1], [0, 0, 1, 1], [], []>} : vector<16x16xbf16>, vector<16x128xbf16>, vector<16x128xf32> -> vector<16x128xf32>
    %8 = arith.addf %3, %7 : vector<16x128xf32>
    %c0_8 = arith.constant 0 : index
    %c0_9 = arith.constant 0 : index
    %9 = vector.load %arg3[%c0_8, %c0_9] : memref<16x16xf32, #tpu.memory_space<vmem>>, vector<16x16xf32>
    %10 = arith.truncf %9 : vector<16x16xf32> to vector<16x16xbf16>
    %c0_10 = arith.constant 0 : index
    %c0_11 = arith.constant 0 : index
    %11 = vector.load %arg6[%c0_10, %c0_11] : memref<16x128xbf16, #tpu.memory_space<vmem>>, vector<16x128xbf16>
    %cst_12 = arith.constant dense<0.000000e+00> : vector<16x128xf32>
    %12 = tpu.matmul %10, %11, %cst_12 {dimension_numbers = #tpu.dot_dimension_numbers<[1], [0], [0], [1], [0, 0, 1, 1], [], []>} : vector<16x16xbf16>, vector<16x128xbf16>, vector<16x128xf32> -> vector<16x128xf32>
    %13 = arith.addf %8, %12 : vector<16x128xf32>
    %c0_13 = arith.constant 0 : index
    %c0_14 = arith.constant 0 : index
    %14 = vector.load %arg7[%c0_13, %c0_14] : memref<1x128xf32, #tpu.memory_space<vmem>>, vector<1x128xf32>
    %15 = vector.broadcast %14 : vector<1x128xf32> to vector<16x128xf32>
    %16 = arith.addf %13, %15 : vector<16x128xf32>
    %cst_15 = arith.constant dense<0.000000e+00> : vector<16xf32>
    %17 = vector.multi_reduction <add>, %16, %cst_15 [1] : vector<16x128xf32> to vector<16xf32>
    %18 = vector.shape_cast %17 : vector<16xf32> to vector<16x1xf32>
    %cst_16 = arith.constant 7.812500e-03 : f32
    %19 = vector.broadcast %cst_16 : f32 to vector<16x1xf32>
    %20 = arith.mulf %18, %19 : vector<16x1xf32>
    %21 = vector.broadcast %20 : vector<16x1xf32> to vector<16x128xf32>
    %22 = arith.subf %16, %21 : vector<16x128xf32>
    %23 = arith.mulf %22, %22 : vector<16x128xf32>
    %cst_17 = arith.constant dense<0.000000e+00> : vector<16xf32>
    %24 = vector.multi_reduction <add>, %23, %cst_17 [1] : vector<16x128xf32> to vector<16xf32>
    %25 = vector.shape_cast %24 : vector<16xf32> to vector<16x1xf32>
    %cst_18 = arith.constant 7.812500e-03 : f32
    %26 = vector.broadcast %cst_18 : f32 to vector<16x1xf32>
    %27 = arith.mulf %25, %26 : vector<16x1xf32>
    %cst_19 = arith.constant 9.99999974E-6 : f32
    %28 = vector.broadcast %cst_19 : f32 to vector<16x1xf32>
    %29 = arith.addf %27, %28 : vector<16x1xf32>
    %30 = math.rsqrt %29 : vector<16x1xf32>
    %31 = vector.broadcast %30 : vector<16x1xf32> to vector<16x128xf32>
    %32 = arith.mulf %22, %31 : vector<16x128xf32>
    %c0_20 = arith.constant 0 : index
    %c0_21 = arith.constant 0 : index
    %33 = vector.load %arg8[%c0_20, %c0_21] : memref<1x128xf32, #tpu.memory_space<vmem>>, vector<1x128xf32>
    %34 = vector.broadcast %33 : vector<1x128xf32> to vector<16x128xf32>
    %35 = arith.mulf %32, %34 : vector<16x128xf32>
    %c0_22 = arith.constant 0 : index
    %c0_23 = arith.constant 0 : index
    %36 = vector.load %arg9[%c0_22, %c0_23] : memref<1x128xf32, #tpu.memory_space<vmem>>, vector<1x128xf32>
    %37 = vector.broadcast %36 : vector<1x128xf32> to vector<16x128xf32>
    %38 = arith.addf %35, %37 : vector<16x128xf32>
    %cst_24 = arith.constant 0.707106769 : f32
    %39 = vector.broadcast %cst_24 : f32 to vector<16x128xf32>
    %40 = arith.mulf %38, %39 : vector<16x128xf32>
    %41 = math.erf %40 : vector<16x128xf32>
    %cst_25 = arith.constant 5.000000e-01 : f32
    %42 = vector.broadcast %cst_25 : f32 to vector<16x128xf32>
    %43 = arith.mulf %42, %41 : vector<16x128xf32>
    %cst_26 = arith.constant 5.000000e-01 : f32
    %44 = vector.broadcast %cst_26 : f32 to vector<16x128xf32>
    %45 = arith.addf %44, %43 : vector<16x128xf32>
    %46 = arith.mulf %38, %45 : vector<16x128xf32>
    %47 = arith.truncf %46 : vector<16x128xf32> to vector<16x128xbf16>
    %c0_27 = arith.constant 0 : index
    %c0_28 = arith.constant 0 : index
    %48 = vector.load %arg10[%c0_27, %c0_28] : memref<128x128xbf16, #tpu.memory_space<vmem>>, vector<128x128xbf16>
    %cst_29 = arith.constant dense<0.000000e+00> : vector<16x128xf32>
    %49 = tpu.matmul %47, %48, %cst_29 {dimension_numbers = #tpu.dot_dimension_numbers<[1], [0], [0], [1], [0, 0, 1, 1], [], []>} : vector<16x128xbf16>, vector<128x128xbf16>, vector<16x128xf32> -> vector<16x128xf32>
    %c0_30 = arith.constant 0 : index
    %c0_31 = arith.constant 0 : index
    %50 = vector.load %arg11[%c0_30, %c0_31] : memref<1x128xf32, #tpu.memory_space<vmem>>, vector<1x128xf32>
    %51 = vector.broadcast %50 : vector<1x128xf32> to vector<16x128xf32>
    %52 = arith.addf %49, %51 : vector<16x128xf32>
    %53 = arith.addf %52, %0 : vector<16x128xf32>
    %c0_32 = arith.constant 0 : index
    %c0_33 = arith.constant 0 : index
    %54 = vector.load %arg12[%c0_32, %c0_33] : memref<16x128xf32, #tpu.memory_space<vmem>>, vector<16x128xf32>
    tpu.vector_store %arg12[%c0_32, %c0_33], %53 {strides = array<i32>} : memref<16x128xf32, #tpu.memory_space<vmem>>, vector<16x128xf32>,
    return
  }
  func.func @transform_0(%arg0: i32) -> (i32, i32) {
    %c0_i32 = arith.constant 0 : i32
    %c0_i32_0 = arith.constant 0 : i32
    return %arg0, %c0_i32 : i32, i32
  }
  func.func @transform_1(%arg0: i32) -> (i32, i32) {
    %c0_i32 = arith.constant 0 : i32
    %c0_i32_0 = arith.constant 0 : i32
    return %arg0, %c0_i32 : i32, i32
  }
  func.func @transform_2(%arg0: i32) -> (i32, i32) {
    %c0_i32 = arith.constant 0 : i32
    %c0_i32_0 = arith.constant 0 : i32
    return %arg0, %c0_i32 : i32, i32
  }
  func.func @transform_3(%arg0: i32) -> (i32, i32) {
    %c0_i32 = arith.constant 0 : i32
    %c0_i32_0 = arith.constant 0 : i32
    %c0_i32_1 = arith.constant 0 : i32
    return %c0_i32, %c0_i32_0 : i32, i32
  }
  func.func @transform_4(%arg0: i32) -> (i32, i32) {
    %c0_i32 = arith.constant 0 : i32
    %c0_i32_0 = arith.constant 0 : i32
    %c0_i32_1 = arith.constant 0 : i32
    return %c0_i32, %c0_i32_0 : i32, i32
  }
  func.func @transform_5(%arg0: i32) -> (i32, i32) {
    %c0_i32 = arith.constant 0 : i32
    %c0_i32_0 = arith.constant 0 : i32
    %c0_i32_1 = arith.constant 0 : i32
    return %c0_i32, %c0_i32_0 : i32, i32
  }
  func.func @transform_6(%arg0: i32) -> (i32, i32) {
    %c0_i32 = arith.constant 0 : i32
    %c0_i32_0 = arith.constant 0 : i32
    %c0_i32_1 = arith.constant 0 : i32
    return %c0_i32, %c0_i32_0 : i32, i32
  }
  func.func @transform_7(%arg0: i32) -> (i32, i32) {
    %c0_i32 = arith.constant 0 : i32
    %c0_i32_0 = arith.constant 0 : i32
    %c0_i32_1 = arith.constant 0 : i32
    return %c0_i32, %c0_i32_0 : i32, i32
  }
  func.func @transform_8(%arg0: i32) -> (i32, i32) {
    %c0_i32 = arith.constant 0 : i32
    %c0_i32_0 = arith.constant 0 : i32
    %c0_i32_1 = arith.constant 0 : i32
    return %c0_i32, %c0_i32_0 : i32, i32
  }
  func.func @transform_9(%arg0: i32) -> (i32, i32) {
    %c0_i32 = arith.constant 0 : i32
    %c0_i32_0 = arith.constant 0 : i32
    %c0_i32_1 = arith.constant 0 : i32
    return %c0_i32, %c0_i32_0 : i32, i32
  }
  func.func @transform_10(%arg0: i32) -> (i32, i32) {
    %c0_i32 = arith.constant 0 : i32
    %c0_i32_0 = arith.constant 0 : i32
    %c0_i32_1 = arith.constant 0 : i32
    return %c0_i32, %c0_i32_0 : i32, i32
  }
  func.func @transform_11(%arg0: i32) -> (i32, i32) {
    %c0_i32 = arith.constant 0 : i32
    %c0_i32_0 = arith.constant 0 : i32
    return %arg0, %c0_i32 : i32, i32
  }
}

</mosaic_0001>

<llo_original>
// kernel: resmlp_block.1
$region0: #{resmlp_block.1}
  #allocation0 [shape = 'u32[]', space=smem, size = 0x4, offset = 0x4, fixed_abs, tag = 'smem constant byte address 0x4 - core index']
  #allocation1 [shape = 'u32[144,128]{1,0:T(1,128)}', space=vmem, size = 0x12000, scoped, tag = 'internal scratch']
  %s0 = inlined_call_operand.vmem [shape: f32[16,128], index: 0, kind: input, shape index: {}]
  %s1 = inlined_call_operand.vmem [shape: f32[16,16], index: 1, kind: input, shape index: {}]
  %s2 = inlined_call_operand.vmem [shape: f32[16,16], index: 2, kind: input, shape index: {}]
  %s3 = inlined_call_operand.vmem [shape: bf16[128,128], index: 3, kind: input, shape index: {}]
  %s4 = inlined_call_operand.vmem [shape: bf16[16,128], index: 4, kind: input, shape index: {}]
  %s5 = inlined_call_operand.vmem [shape: bf16[16,128], index: 5, kind: input, shape index: {}]
  %s6 = inlined_call_operand.vmem [shape: f32[1,128], index: 6, kind: input, shape index: {}]
  %s7 = inlined_call_operand.vmem [shape: f32[1,128], index: 7, kind: input, shape index: {}]
  %s8 = inlined_call_operand.vmem [shape: f32[1,128], index: 8, kind: input, shape index: {}]
  %s9 = inlined_call_operand.hbm [shape: bf16[128,128], index: 9, kind: input, shape index: {}]
  %s10 = inlined_call_operand.vmem [shape: f32[1,128], index: 10, kind: input, shape index: {}]
  %s11 = inlined_call_operand.vmem [shape: f32[16,128], index: 11, kind: output, shape index: {}]
  %s12 = sld [smem:[#allocation0]]
  $region58: #{resmlp_block.1} parent=0
    _
  %s14 = ssub.s32 1, %s12
  %s15 = scalar_select 0, %s14, %s12
  $region1: #{resmlp_block.1} parent=0
    #allocation2 [shape = 'u8[32768]{0}', space=vmem, size = 0x8000, scoped, tag = 'input window, operand 9, single buffered']
    #allocation3 [shape = 's32[1]{0}', space=sflag, size = 0x4, scoped, tag = 'scoped memory for resmlp_block.1']
    %16 = vsyncpa [#allocation3], 0
    // Predicated region
    $region2: #{resmlp_block.1} parent=1 // pred_check
      _
    $region3: #{resmlp_block.1} parent=1 // pred_check_branch
      %18 = sbr.rel (0) target = $region5
    $region4: #{resmlp_block.1} parent=1 // pred_region
      _
    $region5: #{resmlp_block.1} parent=1 // pred_fallthru
      _
    // Predicated region
    $region6: #{resmlp_block.1} parent=1 // pred_check
      _
    $region7: #{resmlp_block.1} parent=1 // pred_check_branch
      %20 = sbr.rel (0) target = $region9
    $region8: #{resmlp_block.1} parent=1 // pred_region
      _
    $region9: #{resmlp_block.1} parent=1 // pred_fallthru
      _
    // Predicated region
    $region10: #{resmlp_block.1} parent=1 // pred_check
      _
    $region11: #{resmlp_block.1} parent=1 // pred_check_branch
      %22 = sbr.rel (0) target = $region13
    $region12: #{resmlp_block.1} parent=1 // pred_region
      _
    $region13: #{resmlp_block.1} parent=1 // pred_fallthru
      _
    // Predicated region
    $region14: #{resmlp_block.1} parent=1 // pred_check
      _
    $region15: #{resmlp_block.1} parent=1 // pred_check_branch
      %24 = sbr.rel (0) target = $region17
    $region16: #{resmlp_block.1} parent=1 // pred_region
      _
    $region17: #{resmlp_block.1} parent=1 // pred_fallthru
      _
    // Predicated region
    $region18: #{resmlp_block.1} parent=1 // pred_check
      _
    $region19: #{resmlp_block.1} parent=1 // pred_check_branch
      %26 = sbr.rel (0) target = $region21
    $region20: #{resmlp_block.1} parent=1 // pred_region
      _
    $region21: #{resmlp_block.1} parent=1 // pred_fallthru
      _
    // Predicated region
    $region22: #{resmlp_block.1} parent=1 // pred_check
      _
    $region23: #{resmlp_block.1} parent=1 // pred_check_branch
      %28 = sbr.rel (0) target = $region25
    $region24: #{resmlp_block.1} parent=1 // pred_region
      _
    $region25: #{resmlp_block.1} parent=1 // pred_fallthru
      _
    // Predicated region
    $region26: #{resmlp_block.1} parent=1 // pred_check
      _
    $region27: #{resmlp_block.1} parent=1 // pred_check_branch
      %30 = sbr.rel (0) target = $region29
    $region28: #{resmlp_block.1} parent=1 // pred_region
      _
    $region29: #{resmlp_block.1} parent=1 // pred_fallthru
      _
    // Predicated region
    $region30: #{resmlp_block.1} parent=1 // pred_check
      _
    $region31: #{resmlp_block.1} parent=1 // pred_check_branch
      %32 = sbr.rel (0) target = $region33
    $region32: #{resmlp_block.1} parent=1 // pred_region
      _
    $region33: #{resmlp_block.1} parent=1 // pred_fallthru
      _
    // Predicated region
    $region34: #{resmlp_block.1} parent=1 // pred_check
      _
    $region35: #{resmlp_block.1} parent=1 // pred_check_branch
      %34 = sbr.rel (0) target = $region37
    $region36: #{resmlp_block.1} parent=1 // pred_region
      _
    $region37: #{resmlp_block.1} parent=1 // pred_fallthru
      _
    // Predicated region
    $region38: #{resmlp_block.1} parent=1 // pred_check
      _
    $region39: #{resmlp_block.1} parent=1 // pred_check_branch
      %36 = sbr.rel (0) target = $region41
    $region40: #{resmlp_block.1} parent=1 // pred_region
      %s38 = ssub.s32 1024, 1024
      %39 = vsyncadd [#allocation3], %s38
      %s40 = sshll.u32 [#allocation2], 4
      %s41 = int_to_ptr.vmem [resolvable:$true] %s40
      %46 = dma.hbm_to_vmem [thread:$0]  %s9, 1024, %s41, [#allocation3], 64, 64, 4
    $region41: #{resmlp_block.1} parent=1 // pred_fallthru
      _
    // Predicated region
    $region42: #{resmlp_block.1} parent=1 // pred_check
      _
    $region43: #{resmlp_block.1} parent=1 // pred_check_branch
      %48 = sbr.rel (0) target = $region45
    $region44: #{resmlp_block.1} parent=1 // pred_region
      _
    $region45: #{resmlp_block.1} parent=1 // pred_fallthru
      _
    // Predicated region
    $region46: #{resmlp_block.1} parent=1 // pred_check
      _
    $region47: #{resmlp_block.1} parent=1 // pred_check_branch
      %50 = sbr.rel (0) target = $region49
    $region48: #{resmlp_block.1} parent=1 // pred_region
      %51 = dma.done [#allocation3], 1024
    $region49: #{resmlp_block.1} parent=1 // pred_fallthru
      _
    %v53 = vld [vmem:[%s0] sm:$0xff]
    %v54 = vld [vmem:[%s0 + $0x8] sm:$0xff]
    %v55 = vpack.c.bf16 %v54, %v53
    %v56 = vld [vmem:[%s3] sm:$0xf]
    %v57 = vld [vmem:[%s3 + $0x4] sm:$0xf]
    %v58 = vld [vmem:[%s3 + $0x8] sm:$0xf]
    %v59 = vld [vmem:[%s3 + $0xc] sm:$0xf]
    %v60 = vld [vmem:[%s3 + $0x10] sm:$0xf]
    %v61 = vld [vmem:[%s3 + $0x14] sm:$0xf]
    %v62 = vld [vmem:[%s3 + $0x18] sm:$0xf]
    %v63 = vld [vmem:[%s3 + $0x1c] sm:$0xf]
    %v64 = vld [vmem:[%s3 + $0x20] sm:$0xf]
    %v65 = vld [vmem:[%s3 + $0x24] sm:$0xf]
    %v66 = vld [vmem:[%s3 + $0x28] sm:$0xf]
    %v67 = vld [vmem:[%s3 + $0x2c] sm:$0xf]
    %v68 = vld [vmem:[%s3 + $0x30] sm:$0xf]
    %v69 = vld [vmem:[%s3 + $0x34] sm:$0xf]
    %v70 = vld [vmem:[%s3 + $0x38] sm:$0xf]
    %v71 = vld [vmem:[%s3 + $0x3c] sm:$0xf]
    %v72 = vld [vmem:[%s1] sm:$0xff]
    %v73 = vld [vmem:[%s1 + $0x8] sm:$0xff]
    %v74 = vpack.c.bf16 %v73, %v72
    %v75 = vld [vmem:[%s4] sm:$0xf]
    %v76 = vld [vmem:[%s4 + $0x4] sm:$0xf]
    %v79 = vunpack.c.l.b16 %v75
    %v80 = vunpack.c.l.b16 %v76
    %v81 = vpack.c.b16 %v80, %v79
    %vm83 = vcmask 130048
    %v85 = vsel %vm83, %v74, 0
    %87 = vmatprep.subr.bf16.mxu0 0
    %88 = vmatpush1.bf16.msra.mxu0 %v81
    %89 = vmatprep.subr.bf16.mxu0 0
    %90 = vmatpush1.bf16.msra.mxu0 0
    %91 = vmatprep.subr.bf16.mxu0 0
    %92 = vmatpush1.bf16.msra.mxu0 0
    %93 = vmatprep.subr.bf16.mxu0 0
    %94 = vmatpush1.bf16.msra.mxu0 0
    %95 = vmatprep.subr.bf16.mxu0 0
    %96 = vmatpush1.bf16.msra.mxu0 0
    %97 = vmatprep.subr.bf16.mxu0 0
    %98 = vmatpush1.bf16.msra.mxu0 0
    %99 = vmatprep.subr.bf16.mxu0 0
    %100 = vmatpush1.bf16.msra.mxu0 0
    %101 = vmatprep.subr.bf16.mxu0 0
    %102 = vmatpush1.bf16.msra.mxu0 0
    %103 = vmatprep.subr.bf16.mxu0 0
    %104 = vmatpush1.bf16.msra.mxu0 0
    %105 = vmatprep.subr.bf16.mxu0 0
    %106 = vmatpush1.bf16.msra.mxu0 0
    %107 = vmatprep.subr.bf16.mxu0 0
    %108 = vmatpush1.bf16.msra.mxu0 0
    %109 = vmatprep.subr.bf16.mxu0 0
    %110 = vmatpush1.bf16.msra.mxu0 0
    %111 = vmatprep.subr.bf16.mxu0 0
    %112 = vmatpush1.bf16.msra.mxu0 0
    %113 = vmatprep.subr.bf16.mxu0 0
    %114 = vmatpush1.bf16.msra.mxu0 0
    %115 = vmatprep.subr.bf16.mxu0 0
    %116 = vmatpush1.bf16.msra.mxu0 0
    %117 = vmatprep.subr.bf16.mxu0 0
    %118 = vmatpush1.bf16.msra.mxu0 0
    %119 = vmatprep.mubr.bf16.mxu0 0
    %120 = vmatmul.mubr.bf16.gmra.mrb[0].mxu0 %v85
    %v121 = vpop.f32.mrb[0].mxu0
    %v122 = vadd.f32 0.0, %v121
    %v123 = vpop.f32.mrb[0].mxu0
    %v124 = vpop.f32.mrb[0].mxu0
    %v125 = vadd.f32 0.0, %v124
    %v126 = vpop.f32.mrb[0].mxu0
    %127 = vdwg.mxu0
    %v144 = vunpack.c.l.b16 %v56
    %v145 = vunpack.c.l.b16 %v57
    %v146 = vunpack.c.l.b16 %v58
    %v147 = vunpack.c.l.b16 %v59
    %v148 = vunpack.c.l.b16 %v60
    %v149 = vunpack.c.l.b16 %v61
    %v150 = vunpack.c.l.b16 %v62
    %v151 = vunpack.c.l.b16 %v63
    %v152 = vunpack.c.l.b16 %v64
    %v153 = vunpack.c.l.b16 %v65
    %v154 = vunpack.c.l.b16 %v66
    %v155 = vunpack.c.l.b16 %v67
    %v156 = vunpack.c.l.b16 %v68
    %v157 = vunpack.c.l.b16 %v69
    %v158 = vunpack.c.l.b16 %v70
    %v159 = vunpack.c.l.b16 %v71
    %v160 = vpack.c.b16 %v145, %v144
    %v161 = vpack.c.b16 %v147, %v146
    %v162 = vpack.c.b16 %v149, %v148
    %v163 = vpack.c.b16 %v151, %v150
    %v164 = vpack.c.b16 %v153, %v152
    %v165 = vpack.c.b16 %v155, %v154
    %v166 = vpack.c.b16 %v157, %v156
    %v167 = vpack.c.b16 %v159, %v158
    %176 = vmatprep.subr.bf16.mxu0 0
    %177 = vmatpush1.bf16.msra.mxu0 %v160
    %178 = vmatprep.subr.bf16.mxu0 0
    %179 = vmatpush1.bf16.msra.mxu0 %v161
    %180 = vmatprep.subr.bf16.mxu0 0
    %181 = vmatpush1.bf16.msra.mxu0 %v162
    %182 = vmatprep.subr.bf16.mxu0 0
    %183 = vmatpush1.bf16.msra.mxu0 %v163
    %184 = vmatprep.subr.bf16.mxu0 0
    %185 = vmatpush1.bf16.msra.mxu0 %v164
    %186 = vmatprep.subr.bf16.mxu0 0
    %187 = vmatpush1.bf16.msra.mxu0 %v165
    %188 = vmatprep.subr.bf16.mxu0 0
    %189 = vmatpush1.bf16.msra.mxu0 %v166
    %190 = vmatprep.subr.bf16.mxu0 0
    %191 = vmatpush1.bf16.msra.mxu0 %v167
    %192 = vmatprep.subr.bf16.mxu0 0
    %193 = vmatpush1.bf16.msra.mxu0 0
    %194 = vmatprep.subr.bf16.mxu0 0
    %195 = vmatpush1.bf16.msra.mxu0 0
    %196 = vmatprep.subr.bf16.mxu0 0
    %197 = vmatpush1.bf16.msra.mxu0 0
    %198 = vmatprep.subr.bf16.mxu0 0
    %199 = vmatpush1.bf16.msra.mxu0 0
    %200 = vmatprep.subr.bf16.mxu0 0
    %201 = vmatpush1.bf16.msra.mxu0 0
    %202 = vmatprep.subr.bf16.mxu0 0
    %203 = vmatpush1.bf16.msra.mxu0 0
    %204 = vmatprep.subr.bf16.mxu0 0
    %205 = vmatpush1.bf16.msra.mxu0 0
    %206 = vmatprep.subr.bf16.mxu0 0
    %207 = vmatpush1.bf16.msra.mxu0 0
    %208 = vmatprep.mubr.bf16.mxu0 0
    %209 = vmatmul.mubr.bf16.gmra.mrb[0].mxu0 %v55
    %v210 = vpop.f32.mrb[0].mxu0
    %v211 = vadd.f32 %v122, %v210
    %v212 = vpop.f32.mrb[0].mxu0
    %v213 = vpop.f32.mrb[0].mxu0
    %v214 = vadd.f32 %v125, %v213
    %v215 = vpop.f32.mrb[0].mxu0
    %216 = vdwg.mxu0
    %v217 = vld [vmem:[%s2] sm:$0xff]
    %v218 = vld [vmem:[%s2 + $0x8] sm:$0xff]
    %v219 = vpack.c.bf16 %v218, %v217
    %v220 = vld [vmem:[%s5] sm:$0xf]
    %v221 = vld [vmem:[%s5 + $0x4] sm:$0xf]
    %v224 = vunpack.c.l.b16 %v220
    %v225 = vunpack.c.l.b16 %v221
    %v226 = vpack.c.b16 %v225, %v224
    %v229 = vsel %vm83, %v219, 0
    %231 = vmatprep.subr.bf16.mxu0 0
    %232 = vmatpush1.bf16.msra.mxu0 %v226
    %233 = vmatprep.subr.bf16.mxu0 0
    %234 = vmatpush1.bf16.msra.mxu0 0
    %235 = vmatprep.subr.bf16.mxu0 0
    %236 = vmatpush1.bf16.msra.mxu0 0
    %237 = vmatprep.subr.bf16.mxu0 0
    %238 = vmatpush1.bf16.msra.mxu0 0
    %239 = vmatprep.subr.bf16.mxu0 0
    %240 = vmatpush1.bf16.msra.mxu0 0
    %241 = vmatprep.subr.bf16.mxu0 0
    %242 = vmatpush1.bf16.msra.mxu0 0
    %243 = vmatprep.subr.bf16.mxu0 0
    %244 = vmatpush1.bf16.msra.mxu0 0
    %245 = vmatprep.subr.bf16.mxu0 0
    %246 = vmatpush1.bf16.msra.mxu0 0
    %247 = vmatprep.subr.bf16.mxu0 0
    %248 = vmatpush1.bf16.msra.mxu0 0
    %249 = vmatprep.subr.bf16.mxu0 0
    %250 = vmatpush1.bf16.msra.mxu0 0
    %251 = vmatprep.subr.bf16.mxu0 0
    %252 = vmatpush1.bf16.msra.mxu0 0
    %253 = vmatprep.subr.bf16.mxu0 0
    %254 = vmatpush1.bf16.msra.mxu0 0
    %255 = vmatprep.subr.bf16.mxu0 0
    %256 = vmatpush1.bf16.msra.mxu0 0
    %257 = vmatprep.subr.bf16.mxu0 0
    %258 = vmatpush1.bf16.msra.mxu0 0
    %259 = vmatprep.subr.bf16.mxu0 0
    %260 = vmatpush1.bf16.msra.mxu0 0
    %261 = vmatprep.subr.bf16.mxu0 0
    %262 = vmatpush1.bf16.msra.mxu0 0
    %263 = vmatprep.mubr.bf16.mxu0 0
    %264 = vmatmul.mubr.bf16.gmra.mrb[0].mxu0 %v229
    %v265 = vpop.f32.mrb[0].mxu0
    %v266 = vadd.f32 0.0, %v265
    %v267 = vpop.f32.mrb[0].mxu0
    %v268 = vpop.f32.mrb[0].mxu0
    %v269 = vadd.f32 0.0, %v268
    %v270 = vpop.f32.mrb[0].mxu0
    %271 = vdwg.mxu0
    %v272 = vadd.f32 %v211, %v266
    %v273 = vadd.f32 %v214, %v269
    %v274 = vld [vmem:[%s6] sm:$0x1]
    %v276 = vlaneseq
    %v277 = vshrl.u32 %v276, 7
    %v278 = vsub.s32 0, %v277
    %v279 = vrot.slane %v274, %v278
    %v281 = vadd.f32 %v272, %v279
    %v282 = vadd.f32 %v273, %v279
    %283 = vadd.xlane.f32.xlu0 %v281
    %v284 = vpop.xlane.xlu0 %283
    %285 = vadd.xlane.f32.xlu0 %v282
    %v286 = vpop.xlane.xlu0 %285
    %v287 = vmul.f32 %v284, 0.0078125
    %v288 = vmul.f32 %v286, 0.0078125
    %v289 = vsub.f32 %v281, %v287
    %v290 = vsub.f32 %v282, %v288
    %v291 = vmul.f32 %v289, %v289
    %v292 = vmul.f32 %v290, %v290
    %293 = vadd.xlane.f32.xlu0 %v291
    %v294 = vpop.xlane.xlu0 %293
    %295 = vadd.xlane.f32.xlu0 %v292
    %v296 = vpop.xlane.xlu0 %295
    %v297 = vmul.f32 %v294, 0.0078125
    %v298 = vmul.f32 %v296, 0.0078125
    %v299 = vadd.f32 %v297, 1e-05
    %v300 = vadd.f32 %v298, 1e-05
    %v301 = vrsqrt.pop %v299
    %v302 = vrsqrt.pop %v300
    %v303 = vmul.f32 %v289, %v301
    %v304 = vmul.f32 %v290, %v302
    %v305 = vld [vmem:[%s7] sm:$0x1]
    %v307 = vlaneseq
    %v308 = vshrl.u32 %v307, 7
    %v309 = vsub.s32 0, %v308
    %v310 = vrot.slane %v305, %v309
    %v312 = vmul.f32 %v303, %v310
    %v313 = vmul.f32 %v304, %v310
    %v314 = vld [vmem:[%s8] sm:$0x1]
    %v316 = vlaneseq
    %v317 = vshrl.u32 %v316, 7
    %v318 = vsub.s32 0, %v317
    %v319 = vrot.slane %v314, %v318
    %v321 = vadd.f32 %v312, %v319
    %v322 = vadd.f32 %v313, %v319
    %v323 = vmul.f32 %v321, 0.70710677
    %v324 = vmul.f32 %v322, 0.70710677
    %v325 = verf.f32.pop %v323
    %v326 = verf.f32.pop %v324
    %v327 = vmul.f32 %v325, 0.5
    %v328 = vmul.f32 %v326, 0.5
    %v329 = vadd.f32 %v327, 0.5
    %v330 = vadd.f32 %v328, 0.5
    %v331 = vmul.f32 %v321, %v329
    %v332 = vmul.f32 %v322, %v330
    %v333 = vpack.c.bf16 %v332, %v331
    %v334 = vld [vmem:[#allocation2] sm:$0xf]
    %v335 = vld [vmem:[#allocation2 + $0x4] sm:$0xf]
    %v336 = vld [vmem:[#allocation2 + $0x8] sm:$0xf]
    %v337 = vld [vmem:[#allocation2 + $0xc] sm:$0xf]
    %v338 = vld [vmem:[#allocation2 + $0x10] sm:$0xf]
    %v339 = vld [vmem:[#allocation2 + $0x14] sm:$0xf]
    %v340 = vld [vmem:[#allocation2 + $0x18] sm:$0xf]
    %v341 = vld [vmem:[#allocation2 + $0x1c] sm:$0xf]
    %v342 = vld [vmem:[#allocation2 + $0x20] sm:$0xf]
    %v343 = vld [vmem:[#allocation2 + $0x24] sm:$0xf]
    %v344 = vld [vmem:[#allocation2 + $0x28] sm:$0xf]
    %v345 = vld [vmem:[#allocation2 + $0x2c] sm:$0xf]
    %v346 = vld [vmem:[#allocation2 + $0x30] sm:$0xf]
    %v347 = vld [vmem:[#allocation2 + $0x34] sm:$0xf]
    %v348 = vld [vmem:[#allocation2 + $0x38] sm:$0xf]
    %v349 = vld [vmem:[#allocation2 + $0x3c] sm:$0xf]
    %v350 = vld [vmem:[%s10] sm:$0x1]
    %v352 = vlaneseq
    %v353 = vshrl.u32 %v352, 7
    %v354 = vsub.s32 0, %v353
    %v355 = vrot.slane %v350, %v354
    %v373 = vunpack.c.l.b16 %v334
    %v374 = vunpack.c.l.b16 %v335
    %v375 = vunpack.c.l.b16 %v336
    %v376 = vunpack.c.l.b16 %v337
    %v377 = vunpack.c.l.b16 %v338
    %v378 = vunpack.c.l.b16 %v339
    %v379 = vunpack.c.l.b16 %v340
    %v380 = vunpack.c.l.b16 %v341
    %v381 = vunpack.c.l.b16 %v342
    %v382 = vunpack.c.l.b16 %v343
    %v383 = vunpack.c.l.b16 %v344
    %v384 = vunpack.c.l.b16 %v345
    %v385 = vunpack.c.l.b16 %v346
    %v386 = vunpack.c.l.b16 %v347
    %v387 = vunpack.c.l.b16 %v348
    %v388 = vunpack.c.l.b16 %v349
    %v389 = vpack.c.b16 %v374, %v373
    %v390 = vpack.c.b16 %v376, %v375
    %v391 = vpack.c.b16 %v378, %v377
    %v392 = vpack.c.b16 %v380, %v379
    %v393 = vpack.c.b16 %v382, %v381
    %v394 = vpack.c.b16 %v384, %v383
    %v395 = vpack.c.b16 %v386, %v385
    %v396 = vpack.c.b16 %v388, %v387
    %405 = vmatprep.subr.bf16.mxu0 0
    %406 = vmatpush1.bf16.msra.mxu0 %v389
    %407 = vmatprep.subr.bf16.mxu0 0
    %408 = vmatpush1.bf16.msra.mxu0 %v390
    %409 = vmatprep.subr.bf16.mxu0 0
    %410 = vmatpush1.bf16.msra.mxu0 %v391
    %411 = vmatprep.subr.bf16.mxu0 0
    %412 = vmatpush1.bf16.msra.mxu0 %v392
    %413 = vmatprep.subr.bf16.mxu0 0
    %414 = vmatpush1.bf16.msra.mxu0 %v393
    %415 = vmatprep.subr.bf16.mxu0 0
    %416 = vmatpush1.bf16.msra.mxu0 %v394
    %417 = vmatprep.subr.bf16.mxu0 0
    %418 = vmatpush1.bf16.msra.mxu0 %v395
    %419 = vmatprep.subr.bf16.mxu0 0
    %420 = vmatpush1.bf16.msra.mxu0 %v396
    %421 = vmatprep.subr.bf16.mxu0 0
    %422 = vmatpush1.bf16.msra.mxu0 0
    %423 = vmatprep.subr.bf16.mxu0 0
    %424 = vmatpush1.bf16.msra.mxu0 0
    %425 = vmatprep.subr.bf16.mxu0 0
    %426 = vmatpush1.bf16.msra.mxu0 0
    %427 = vmatprep.subr.bf16.mxu0 0
    %428 = vmatpush1.bf16.msra.mxu0 0
    %429 = vmatprep.subr.bf16.mxu0 0
    %430 = vmatpush1.bf16.msra.mxu0 0
    %431 = vmatprep.subr.bf16.mxu0 0
    %432 = vmatpush1.bf16.msra.mxu0 0
    %433 = vmatprep.subr.bf16.mxu0 0
    %434 = vmatpush1.bf16.msra.mxu0 0
    %435 = vmatprep.subr.bf16.mxu0 0
    %436 = vmatpush1.bf16.msra.mxu0 0
    %437 = vmatprep.mubr.bf16.mxu0 0
    %438 = vmatmul.mubr.bf16.gmra.mrb[0].mxu0 %v333
    %v439 = vpop.f32.mrb[0].mxu0
    %v440 = vadd.f32 %v355, %v439
    %v441 = vpop.f32.mrb[0].mxu0
    %v442 = vpop.f32.mrb[0].mxu0
    %v443 = vadd.f32 %v355, %v442
    %v444 = vpop.f32.mrb[0].mxu0
    %445 = vdwg.mxu0
    %v446 = vadd.f32 %v440, %v53
    %v447 = vadd.f32 %v443, %v54
    %448 = vst [vmem:[%s11] sm:$0xff] %v446
    %449 = vst [vmem:[%s11 + $0x8] sm:$0xff] %v447
    // Predicated region
    $region50: #{resmlp_block.1} parent=1 // pred_check
      _
    $region51: #{resmlp_block.1} parent=1 // pred_check_branch
      %451 = sbr.rel (0) target = $region53
    $region52: #{resmlp_block.1} parent=1 // pred_region
      _
    $region53: #{resmlp_block.1} parent=1 // pred_fallthru
      _
    // Predicated region
    $region54: #{resmlp_block.1} parent=1 // pred_check
      _
    $region55: #{resmlp_block.1} parent=1 // pred_check_branch
      %453 = sbr.rel (0) target = $region57
    $region56: #{resmlp_block.1} parent=1 // pred_region
      _
    $region57: #{resmlp_block.1} parent=1 // pred_fallthru
      _
    %454 = vsyncpa [#allocation3], 1

</llo_original>
